<compile_context>
chip_gen: v5e
topology: v5e:2x2
jax: 0.10.0
libtpu: 0.0.40
codegen_flags: <defaults>
</compile_context>

<pallas_src>
import math
import functools

import jax
import jax.numpy as jnp
from jax.experimental import pallas as pl
from jax.experimental.pallas import tpu as pltpu

# ----------------------------- config (small, synthetic) ---------------------
BATCH = 2
SEQ = 8
D_MODEL = 32
N_HEADS = 4
D_HEAD = D_MODEL // N_HEADS
CAUSAL = False                      # config.causal (demo default)
EPS = 1.1920928955078125e-07        # torch.finfo(torch.float32).eps (RMSNorm default)
SCALE = 1.0 / math.sqrt(D_HEAD)


# ----------------------------- Pallas kernel ---------------------------------
def attn_kernel(x_ref, wqkv_ref, bqkv_ref, wout_ref, bout_ref,
                qscale_ref, kscale_ref, o_ref, *,
                causal: bool, seq: int, n_heads: int, d_head: int):
    d_model = n_heads * d_head

    # ---- QKV projection: (N, D) @ (D, 3D), bf16 operands / f32 accumulation.
    qkv = jax.lax.dot_general(
        x_ref[0], wqkv_ref[...],                  # both bf16 (wrapper casts)
        dimension_numbers=(((1,), (0,)), ((), ())),
        preferred_element_type=jnp.float32)
    qkv = qkv + bqkv_ref[...]                     # (N, 3D) f32

    q = qkv[:, :d_model]
    k = qkv[:, d_model:2 * d_model]
    v = qkv[:, 2 * d_model:]

    # ---- Split heads into a leading batch dim (H, N, d): static lane slices +
    # leading-dim stack only.  The attention einsums then contract d_head lanes
    # per head instead of the full D (no masked H x FLOP blow-up).
    def to_heads(t):                              # (N, H*d) -> (H, N, d)
        return jnp.stack(
            [t[:, h * d_head:(h + 1) * d_head] for h in range(n_heads)], axis=0)

    q3 = to_heads(q)
    k3 = to_heads(k)
    v3 = to_heads(v)

    # ---- QK-RMSNorm over the head dim.  d_head is the lane dim here, so the
    # reduction is a plain last-axis sum (no MXU group matrix, no iota consts).
    # Elementwise math stays f32.
    def rms_norm(t, scale_row):                   # t (H, N, d); scale_row (1, d)
        ms = jnp.mean(t * t, axis=-1, keepdims=True)
        return t * jax.lax.rsqrt(ms + EPS) * scale_row[None, :, :]

    qn = rms_norm(q3, qscale_ref[...])
    kn = rms_norm(k3, kscale_ref[...])

    # ---- Scores: bf16 operands, f32 accumulation; contract last dims (no k.T).
    s = jnp.einsum('hqd,hkd->hqk',
                   qn.astype(jnp.bfloat16), kn.astype(jnp.bfloat16),
                   preferred_element_type=jnp.float32) * (1.0 / math.sqrt(d_head))
    if causal:
        # Single (N, N) mask broadcast over heads (diagonal always unmasked, so
        # no fully-masked rows / NaN risk here).
        # TODO(synk): at real sizes build from tile-local (tq, tk) iotas offset
        # by program_id and pl.when-skip fully-masked kv tiles.
        row = jax.lax.broadcasted_iota(jnp.int32, (seq, seq), 0)
        col = jax.lax.broadcasted_iota(jnp.int32, (seq, seq), 1)
        s = jnp.where((col <= row)[None, :, :], s, -jnp.inf)

    # Softmax in f32; denominator reciprocal on the EUP (approx).
    s = s - jnp.max(s, axis=-1, keepdims=True)
    p = jnp.exp(s)
    p = p * pl.reciprocal(jnp.sum(p, axis=-1, keepdims=True), approx=True)

    # ---- PV: bf16 operands, f32 accumulation.  (H, N, d)
    o3 = jnp.einsum('hqk,hkd->hqd',
                    p.astype(jnp.bfloat16), v3.astype(jnp.bfloat16),
                    preferred_element_type=jnp.float32)

    # Merge heads back to the packed 'b n (h d)' lane layout via a lane concat
    # (no mostly-zero full-width adds, no extra vreg-resident head copies).
    attn = jnp.concatenate([o3[h] for h in range(n_heads)], axis=-1)   # (N, D)

    # ---- Output projection: (N, D) @ (D, D), bf16 operands / f32 accumulation.
    # NOTE: D=32 (<128) makes this store a masked vst at demo size; at real model
    # sizes keep the stored last dim a multiple of 128 for lane-dense stores.
    out = jax.lax.dot_general(
        attn.astype(jnp.bfloat16), wout_ref[...],
        dimension_numbers=(((1,), (0,)), ((), ())),
        preferred_element_type=jnp.float32)
    out = out + bout_ref[...]
    o_ref[0] = out.astype(o_ref.dtype)


def attn_pallas(x, wqkv, bqkv, wout, bout, qscale, kscale, *,
                n_heads=N_HEADS, causal=CAUSAL):
    B, N, D = x.shape
    d_head = D // n_heads

    # bf16 matmul operands everywhere (f32 accumulation in-kernel); biases and
    # RMSNorm scales stay f32.
    x_bf = x.astype(jnp.bfloat16)
    wqkv_bf = wqkv.astype(jnp.bfloat16)
    wout_bf = wout.astype(jnp.bfloat16)

    kernel = functools.partial(attn_kernel, causal=causal, seq=N,
                               n_heads=n_heads, d_head=d_head)

    # Grid over batch, marked "parallel": independent steps -> megacore on v7x.
    # Weights / biases / scales use constant index_maps so they stay resident.
    # At larger N, add a parallel q-tile axis + flash-style kv streaming sized
    # for v7x's 64 MiB VMEM (raise vmem_limit_bytes accordingly).
    out = pl.pallas_call(
        kernel,
        out_shape=jax.ShapeDtypeStruct((B, N, D), jnp.float32),
        grid=(B,),
        in_specs=[
            pl.BlockSpec((1, N, D), lambda b: (b, 0, 0)),        # x (bf16)
            pl.BlockSpec((D, 3 * D), lambda b: (0, 0)),          # W_qkv (bf16, resident)
            pl.BlockSpec((1, 3 * D), lambda b: (0, 0)),          # b_qkv (f32)
            pl.BlockSpec((D, D), lambda b: (0, 0)),              # W_out (bf16, resident)
            pl.BlockSpec((1, D), lambda b: (0, 0)),              # b_out (f32)
            pl.BlockSpec((1, d_head), lambda b: (0, 0)),         # q RMSNorm scale
            pl.BlockSpec((1, d_head), lambda b: (0, 0)),         # k RMSNorm scale
        ],
        out_specs=pl.BlockSpec((1, N, D), lambda b: (b, 0, 0)),
        compiler_params=pltpu.CompilerParams(
            dimension_semantics=("parallel",)),
    )(x_bf, wqkv_bf, bqkv, wout_bf, bout, qscale, kscale)
    return out


# ----------------------------- pure-JAX reference -----------------------------
def attn_ref(x, wqkv, bqkv, wout, bout, qscale, kscale, *, causal=CAUSAL):
    B, N, D = x.shape
    qkv = x @ wqkv + bqkv[0]                                        # (B, N, 3D)
    qkv = qkv.reshape(B, N, 3, N_HEADS, D_HEAD).transpose(2, 0, 3, 1, 4)
    q, k, v = qkv[0], qkv[1], qkv[2]                                # (B, H, N, d)
    q = q * jax.lax.rsqrt(jnp.mean(q * q, -1, keepdims=True) + EPS) * qscale[0]
    k = k * jax.lax.rsqrt(jnp.mean(k * k, -1, keepdims=True) + EPS) * kscale[0]
    s = jnp.einsum('bhqd,bhkd->bhqk', q, k) * SCALE
    if causal:
        mask = jnp.tril(jnp.ones((N, N), dtype=bool))
        s = jnp.where(mask, s, -jnp.inf)
    p = jax.nn.softmax(s, axis=-1)
    o = jnp.einsum('bhqk,bhkd->bhqd', p, v)
    o = o.transpose(0, 2, 1, 3).reshape(B, N, D)
    return o @ wout + bout[0]


# ----------------------------- main -------------------------------------------
if __name__ == "__main__":
    key = jax.random.PRNGKey(0)
    kx, kw1, kb1, kw2, kb2, ks1, ks2 = jax.random.split(key, 7)

    x = jax.random.normal(kx, (BATCH, SEQ, D_MODEL), dtype=jnp.float32)

    # Deterministic synthetic parameters (shapes from nn.Linear / QKNorm in __init__).
    wqkv = jax.random.normal(kw1, (D_MODEL, 3 * D_MODEL), dtype=jnp.float32) * 0.05
    bqkv = jax.random.normal(kb1, (1, 3 * D_MODEL), dtype=jnp.float32) * 0.01
    wout = jax.random.normal(kw2, (D_MODEL, D_MODEL), dtype=jnp.float32) * 0.05
    bout = jax.random.normal(kb2, (1, D_MODEL), dtype=jnp.float32) * 0.01
    # RMSNorm weights init to ones; perturb slightly so the per-head scale path is exercised.
    qscale = 1.0 + 0.1 * jax.random.normal(ks1, (1, D_HEAD), dtype=jnp.float32)
    kscale = 1.0 + 0.1 * jax.random.normal(ks2, (1, D_HEAD), dtype=jnp.float32)

    for causal in (False, True):
        out = attn_pallas(x, wqkv, bqkv, wout, bout, qscale, kscale, causal=causal)
        out = jax.block_until_ready(out)
        ref = attn_ref(x, wqkv, bqkv, wout, bout, qscale, kscale, causal=causal)
        assert out.shape == (BATCH, SEQ, D_MODEL)
        max_err = jnp.max(jnp.abs(out - ref))
        # Tolerance accounts for bf16 matmul operands (f32 accumulation) and the
        # approximate EUP reciprocal in the softmax denominator (inference-grade).
        assert jnp.allclose(out, ref, atol=2e-2, rtol=2e-2), \
            f"causal={causal}: max abs err {max_err}"

    print("KERNEL_OK")
</pallas_src>

<mosaic_0001>
module attributes {stable_mosaic.version = 11 : i64} {
  func.func @attn_kernel(%arg0: i32, %arg1: memref<1x8x32xbf16, #tpu.memory_space<vmem>>, %arg2: memref<32x96xbf16, #tpu.memory_space<vmem>>, %arg3: memref<1x96xf32, #tpu.memory_space<vmem>>, %arg4: memref<32x32xbf16, #tpu.memory_space<vmem>>, %arg5: memref<1x32xf32, #tpu.memory_space<vmem>>, %arg6: memref<1x8xf32, #tpu.memory_space<vmem>>, %arg7: memref<1x8xf32, #tpu.memory_space<vmem>>, %arg8: memref<1x8x32xf32, #tpu.memory_space<vmem>>) attributes {dimension_semantics = [#tpu.dimension_semantics<parallel>], iteration_bounds = array<i64: 2>, scalar_prefetch = 0 : i64, scratch_operands = 0 : i64, tpu.core_type = #tpu.core_type<tc>, window_params = [{transform_indices = @transform_0, window_bounds = array<i64: 1, 8, 32>}, {pipeline_mode = #tpu.pipeline_mode<synchronous>, transform_indices = @transform_1, window_bounds = array<i64: 32, 96>}, {pipeline_mode = #tpu.pipeline_mode<synchronous>, transform_indices = @transform_2, window_bounds = array<i64: 1, 96>}, {pipeline_mode = #tpu.pipeline_mode<synchronous>, transform_indices = @transform_3, window_bounds = array<i64: 32, 32>}, {pipeline_mode = #tpu.pipeline_mode<synchronous>, transform_indices = @transform_4, window_bounds = array<i64: 1, 32>}, {pipeline_mode = #tpu.pipeline_mode<synchronous>, transform_indices = @transform_5, window_bounds = array<i64: 1, 8>}, {pipeline_mode = #tpu.pipeline_mode<synchronous>, transform_indices = @transform_6, window_bounds = array<i64: 1, 8>}, {transform_indices = @transform_7, window_bounds = array<i64: 1, 8, 32>}]} {
    %c0 = arith.constant 0 : index
    %c0_0 = arith.constant 0 : index
    %c0_1 = arith.constant 0 : index
    %0 = vector.load %arg1[%c0, %c0_0, %c0_1] : memref<1x8x32xbf16, #tpu.memory_space<vmem>>, vector<1x8x32xbf16>
    %1 = vector.shape_cast %0 : vector<1x8x32xbf16> to vector<8x32xbf16>
    %c0_2 = arith.constant 0 : index
    %c0_3 = arith.constant 0 : index
    %2 = vector.load %arg2[%c0_2, %c0_3] : memref<32x96xbf16, #tpu.memory_space<vmem>>, vector<32x96xbf16>
    %cst = arith.constant dense<0.000000e+00> : vector<8x96xf32>
    %3 = tpu.matmul %1, %2, %cst {dimension_numbers = #tpu.dot_dimension_numbers<[1], [0], [0], [1], [0, 0, 1, 1], [], []>} : vector<8x32xbf16>, vector<32x96xbf16>, vector<8x96xf32> -> vector<8x96xf32>
    %c0_4 = arith.constant 0 : index
    %c0_5 = arith.constant 0 : index
    %4 = vector.load %arg3[%c0_4, %c0_5] : memref<1x96xf32, #tpu.memory_space<vmem>>, vector<1x96xf32>
    %5 = vector.broadcast %4 : vector<1x96xf32> to vector<8x96xf32>
    %6 = arith.addf %3, %5 : vector<8x96xf32>
    %7 = vector.extract_strided_slice %6 {offsets = [0, 0], sizes = [8, 32], strides = [1, 1]} : vector<8x96xf32> to vector<8x32xf32>
    %8 = vector.extract_strided_slice %6 {offsets = [0, 32], sizes = [8, 32], strides = [1, 1]} : vector<8x96xf32> to vector<8x32xf32>
    %9 = vector.extract_strided_slice %6 {offsets = [0, 64], sizes = [8, 32], strides = [1, 1]} : vector<8x96xf32> to vector<8x32xf32>
    %10 = vector.extract_strided_slice %7 {offsets = [0, 0], sizes = [8, 8], strides = [1, 1]} : vector<8x32xf32> to vector<8x8xf32>
    %11 = vector.extract_strided_slice %7 {offsets = [0, 8], sizes = [8, 8], strides = [1, 1]} : vector<8x32xf32> to vector<8x8xf32>
    %12 = vector.extract_strided_slice %7 {offsets = [0, 16], sizes = [8, 8], strides = [1, 1]} : vector<8x32xf32> to vector<8x8xf32>
    %13 = vector.extract_strided_slice %7 {offsets = [0, 24], sizes = [8, 8], strides = [1, 1]} : vector<8x32xf32> to vector<8x8xf32>
    %14 = vector.shape_cast %10 : vector<8x8xf32> to vector<1x8x8xf32>
    %15 = vector.shape_cast %11 : vector<8x8xf32> to vector<1x8x8xf32>
    %16 = vector.shape_cast %12 : vector<8x8xf32> to vector<1x8x8xf32>
    %17 = vector.shape_cast %13 : vector<8x8xf32> to vector<1x8x8xf32>
    %18 = tpu.concatenate %14, %15, %16, %17 in 0 : vector<1x8x8xf32>, vector<1x8x8xf32>, vector<1x8x8xf32>, vector<1x8x8xf32> -> vector<4x8x8xf32>
    %19 = vector.extract_strided_slice %8 {offsets = [0, 0], sizes = [8, 8], strides = [1, 1]} : vector<8x32xf32> to vector<8x8xf32>
    %20 = vector.extract_strided_slice %8 {offsets = [0, 8], sizes = [8, 8], strides = [1, 1]} : vector<8x32xf32> to vector<8x8xf32>
    %21 = vector.extract_strided_slice %8 {offsets = [0, 16], sizes = [8, 8], strides = [1, 1]} : vector<8x32xf32> to vector<8x8xf32>
    %22 = vector.extract_strided_slice %8 {offsets = [0, 24], sizes = [8, 8], strides = [1, 1]} : vector<8x32xf32> to vector<8x8xf32>
    %23 = vector.shape_cast %19 : vector<8x8xf32> to vector<1x8x8xf32>
    %24 = vector.shape_cast %20 : vector<8x8xf32> to vector<1x8x8xf32>
    %25 = vector.shape_cast %21 : vector<8x8xf32> to vector<1x8x8xf32>
    %26 = vector.shape_cast %22 : vector<8x8xf32> to vector<1x8x8xf32>
    %27 = tpu.concatenate %23, %24, %25, %26 in 0 : vector<1x8x8xf32>, vector<1x8x8xf32>, vector<1x8x8xf32>, vector<1x8x8xf32> -> vector<4x8x8xf32>
    %28 = vector.extract_strided_slice %9 {offsets = [0, 0], sizes = [8, 8], strides = [1, 1]} : vector<8x32xf32> to vector<8x8xf32>
    %29 = vector.extract_strided_slice %9 {offsets = [0, 8], sizes = [8, 8], strides = [1, 1]} : vector<8x32xf32> to vector<8x8xf32>
    %30 = vector.extract_strided_slice %9 {offsets = [0, 16], sizes = [8, 8], strides = [1, 1]} : vector<8x32xf32> to vector<8x8xf32>
    %31 = vector.extract_strided_slice %9 {offsets = [0, 24], sizes = [8, 8], strides = [1, 1]} : vector<8x32xf32> to vector<8x8xf32>
    %32 = vector.shape_cast %28 : vector<8x8xf32> to vector<1x8x8xf32>
    %33 = vector.shape_cast %29 : vector<8x8xf32> to vector<1x8x8xf32>
    %34 = vector.shape_cast %30 : vector<8x8xf32> to vector<1x8x8xf32>
    %35 = vector.shape_cast %31 : vector<8x8xf32> to vector<1x8x8xf32>
    %36 = tpu.concatenate %32, %33, %34, %35 in 0 : vector<1x8x8xf32>, vector<1x8x8xf32>, vector<1x8x8xf32>, vector<1x8x8xf32> -> vector<4x8x8xf32>
    %c0_6 = arith.constant 0 : index
    %c0_7 = arith.constant 0 : index
    %37 = vector.load %arg6[%c0_6, %c0_7] : memref<1x8xf32, #tpu.memory_space<vmem>>, vector<1x8xf32>
    %38 = arith.mulf %18, %18 : vector<4x8x8xf32>
    %cst_8 = arith.constant dense<0.000000e+00> : vector<4x8xf32>
    %39 = vector.multi_reduction <add>, %38, %cst_8 [2] : vector<4x8x8xf32> to vector<4x8xf32>
    %40 = vector.shape_cast %39 : vector<4x8xf32> to vector<4x8x1xf32>
    %cst_9 = arith.constant 8.000000e+00 : f32
    %41 = vector.broadcast %cst_9 : f32 to vector<4x8x1xf32>
    %42 = arith.divf %40, %41 : vector<4x8x1xf32>
    %cst_10 = arith.constant 1.1920929E-7 : f32
    %43 = vector.broadcast %cst_10 : f32 to vector<4x8x1xf32>
    %44 = arith.addf %42, %43 : vector<4x8x1xf32>
    %45 = math.rsqrt %44 : vector<4x8x1xf32>
    %46 = vector.broadcast %45 : vector<4x8x1xf32> to vector<4x8x8xf32>
    %47 = arith.mulf %18, %46 : vector<4x8x8xf32>
    %48 = vector.shape_cast %37 : vector<1x8xf32> to vector<1x1x8xf32>
    %49 = vector.broadcast %48 : vector<1x1x8xf32> to vector<4x8x8xf32>
    %50 = arith.mulf %47, %49 : vector<4x8x8xf32>
    %c0_11 = arith.constant 0 : index
    %c0_12 = arith.constant 0 : index
    %51 = vector.load %arg7[%c0_11, %c0_12] : memref<1x8xf32, #tpu.memory_space<vmem>>, vector<1x8xf32>
    %52 = arith.mulf %27, %27 : vector<4x8x8xf32>
    %cst_13 = arith.constant dense<0.000000e+00> : vector<4x8xf32>
    %53 = vector.multi_reduction <add>, %52, %cst_13 [2] : vector<4x8x8xf32> to vector<4x8xf32>
    %54 = vector.shape_cast %53 : vector<4x8xf32> to vector<4x8x1xf32>
    %cst_14 = arith.constant 8.000000e+00 : f32
    %55 = vector.broadcast %cst_14 : f32 to vector<4x8x1xf32>
    %56 = arith.divf %54, %55 : vector<4x8x1xf32>
    %cst_15 = arith.constant 1.1920929E-7 : f32
    %57 = vector.broadcast %cst_15 : f32 to vector<4x8x1xf32>
    %58 = arith.addf %56, %57 : vector<4x8x1xf32>
    %59 = math.rsqrt %58 : vector<4x8x1xf32>
    %60 = vector.broadcast %59 : vector<4x8x1xf32> to vector<4x8x8xf32>
    %61 = arith.mulf %27, %60 : vector<4x8x8xf32>
    %62 = vector.shape_cast %51 : vector<1x8xf32> to vector<1x1x8xf32>
    %63 = vector.broadcast %62 : vector<1x1x8xf32> to vector<4x8x8xf32>
    %64 = arith.mulf %61, %63 : vector<4x8x8xf32>
    %65 = arith.truncf %50 : vector<4x8x8xf32> to vector<4x8x8xbf16>
    %66 = arith.truncf %64 : vector<4x8x8xf32> to vector<4x8x8xbf16>
    "tpu.trace_start"() <{level = 10 : i32, message = "hqd,hkd->hqk"}> : () -> ()
    %cst_16 = arith.constant dense<0.000000e+00> : vector<4x8x8xf32>
    %67 = tpu.matmul %65, %66, %cst_16 {dimension_numbers = #tpu.dot_dimension_numbers<[2], [2], [1], [1], [0, 0, 0, 1, 1, 1], [0], [0]>} : vector<4x8x8xbf16>, vector<4x8x8xbf16>, vector<4x8x8xf32> -> vector<4x8x8xf32>
    "tpu.trace_stop"() : () -> ()
    %cst_17 = arith.constant 0.353553385 : f32
    %68 = vector.broadcast %cst_17 : f32 to vector<4x8x8xf32>
    %69 = arith.mulf %67, %68 : vector<4x8x8xf32>
    %cst_18 = arith.constant dense<0xFF800000> : vector<4x8xf32>
    %70 = vector.multi_reduction <maximumf>, %69, %cst_18 [2] : vector<4x8x8xf32> to vector<4x8xf32>
    %71 = vector.shape_cast %70 : vector<4x8xf32> to vector<4x8x1xf32>
    %72 = vector.broadcast %71 : vector<4x8x1xf32> to vector<4x8x8xf32>
    %73 = arith.subf %69, %72 : vector<4x8x8xf32>
    %74 = math.exp %73 : vector<4x8x8xf32>
    %cst_19 = arith.constant dense<0.000000e+00> : vector<4x8xf32>
    %75 = vector.multi_reduction <add>, %74, %cst_19 [2] : vector<4x8x8xf32> to vector<4x8xf32>
    %76 = vector.shape_cast %75 : vector<4x8xf32> to vector<4x8x1xf32>
    %77 = tpu.reciprocal %76 {approx = true} : vector<4x8x1xf32> -> vector<4x8x1xf32>
    %78 = vector.broadcast %77 : vector<4x8x1xf32> to vector<4x8x8xf32>
    %79 = arith.mulf %74, %78 : vector<4x8x8xf32>
    %80 = arith.truncf %79 : vector<4x8x8xf32> to vector<4x8x8xbf16>
    %81 = arith.truncf %36 : vector<4x8x8xf32> to vector<4x8x8xbf16>
    "tpu.trace_start"() <{level = 10 : i32, message = "hqk,hkd->hqd"}> : () -> ()
    %cst_20 = arith.constant dense<0.000000e+00> : vector<4x8x8xf32>
    %82 = tpu.matmul %80, %81, %cst_20 {dimension_numbers = #tpu.dot_dimension_numbers<[2], [1], [1], [2], [0, 0, 0, 1, 1, 2], [0], [0]>} : vector<4x8x8xbf16>, vector<4x8x8xbf16>, vector<4x8x8xf32> -> vector<4x8x8xf32>
    "tpu.trace_stop"() : () -> ()
    %83 = vector.extract_strided_slice %82 {offsets = [0, 0, 0], sizes = [1, 8, 8], strides = [1, 1, 1]} : vector<4x8x8xf32> to vector<1x8x8xf32>
    %84 = vector.shape_cast %83 : vector<1x8x8xf32> to vector<8x8xf32>
    %85 = vector.extract_strided_slice %82 {offsets = [1, 0, 0], sizes = [1, 8, 8], strides = [1, 1, 1]} : vector<4x8x8xf32> to vector<1x8x8xf32>
    %86 = vector.shape_cast %85 : vector<1x8x8xf32> to vector<8x8xf32>
    %87 = vector.extract_strided_slice %82 {offsets = [2, 0, 0], sizes = [1, 8, 8], strides = [1, 1, 1]} : vector<4x8x8xf32> to vector<1x8x8xf32>
    %88 = vector.shape_cast %87 : vector<1x8x8xf32> to vector<8x8xf32>
    %89 = vector.extract_strided_slice %82 {offsets = [3, 0, 0], sizes = [1, 8, 8], strides = [1, 1, 1]} : vector<4x8x8xf32> to vector<1x8x8xf32>
    %90 = vector.shape_cast %89 : vector<1x8x8xf32> to vector<8x8xf32>
    %91 = tpu.concatenate %84, %86, %88, %90 in 1 : vector<8x8xf32>, vector<8x8xf32>, vector<8x8xf32>, vector<8x8xf32> -> vector<8x32xf32>
    %92 = arith.truncf %91 : vector<8x32xf32> to vector<8x32xbf16>
    %c0_21 = arith.constant 0 : index
    %c0_22 = arith.constant 0 : index
    %93 = vector.load %arg4[%c0_21, %c0_22] : memref<32x32xbf16, #tpu.memory_space<vmem>>, vector<32x32xbf16>
    %cst_23 = arith.constant dense<0.000000e+00> : vector<8x32xf32>
    %94 = tpu.matmul %92, %93, %cst_23 {dimension_numbers = #tpu.dot_dimension_numbers<[1], [0], [0], [1], [0, 0, 1, 1], [], []>} : vector<8x32xbf16>, vector<32x32xbf16>, vector<8x32xf32> -> vector<8x32xf32>
    %c0_24 = arith.constant 0 : index
    %c0_25 = arith.constant 0 : index
    %95 = vector.load %arg5[%c0_24, %c0_25] : memref<1x32xf32, #tpu.memory_space<vmem>>, vector<1x32xf32>
    %96 = vector.broadcast %95 : vector<1x32xf32> to vector<8x32xf32>
    %97 = arith.addf %94, %96 : vector<8x32xf32>
    %c0_26 = arith.constant 0 : index
    %c0_27 = arith.constant 0 : index
    %c0_28 = arith.constant 0 : index
    %98 = vector.load %arg8[%c0_26, %c0_27, %c0_28] : memref<1x8x32xf32, #tpu.memory_space<vmem>>, vector<1x8x32xf32>
    %99 = vector.shape_cast %98 : vector<1x8x32xf32> to vector<8x32xf32>
    %100 = vector.shape_cast %97 : vector<8x32xf32> to vector<1x8x32xf32>
    tpu.vector_store %arg8[%c0_26, %c0_27, %c0_28], %100 {strides = array<i32>} : memref<1x8x32xf32, #tpu.memory_space<vmem>>, vector<1x8x32xf32>,
    return
  }
  func.func @transform_0(%arg0: i32) -> (i32, i32, i32) {
    %c0_i32 = arith.constant 0 : i32
    %c0_i32_0 = arith.constant 0 : i32
    %c0_i32_1 = arith.constant 0 : i32
    return %arg0, %c0_i32, %c0_i32_0 : i32, i32, i32
  }
  func.func @transform_1(%arg0: i32) -> (i32, i32) {
    %c0_i32 = arith.constant 0 : i32
    %c0_i32_0 = arith.constant 0 : i32
    %c0_i32_1 = arith.constant 0 : i32
    return %c0_i32, %c0_i32_0 : i32, i32
  }
  func.func @transform_2(%arg0: i32) -> (i32, i32) {
    %c0_i32 = arith.constant 0 : i32
    %c0_i32_0 = arith.constant 0 : i32
    %c0_i32_1 = arith.constant 0 : i32
    return %c0_i32, %c0_i32_0 : i32, i32
  }
  func.func @transform_3(%arg0: i32) -> (i32, i32) {
    %c0_i32 = arith.constant 0 : i32
    %c0_i32_0 = arith.constant 0 : i32
    %c0_i32_1 = arith.constant 0 : i32
    return %c0_i32, %c0_i32_0 : i32, i32
  }
  func.func @transform_4(%arg0: i32) -> (i32, i32) {
    %c0_i32 = arith.constant 0 : i32
    %c0_i32_0 = arith.constant 0 : i32
    %c0_i32_1 = arith.constant 0 : i32
    return %c0_i32, %c0_i32_0 : i32, i32
  }
  func.func @transform_5(%arg0: i32) -> (i32, i32) {
    %c0_i32 = arith.constant 0 : i32
    %c0_i32_0 = arith.constant 0 : i32
    %c0_i32_1 = arith.constant 0 : i32
    return %c0_i32, %c0_i32_0 : i32, i32
  }
  func.func @transform_6(%arg0: i32) -> (i32, i32) {
    %c0_i32 = arith.constant 0 : i32
    %c0_i32_0 = arith.constant 0 : i32
    %c0_i32_1 = arith.constant 0 : i32
    return %c0_i32, %c0_i32_0 : i32, i32
  }
  func.func @transform_7(%arg0: i32) -> (i32, i32, i32) {
    %c0_i32 = arith.constant 0 : i32
    %c0_i32_0 = arith.constant 0 : i32
    %c0_i32_1 = arith.constant 0 : i32
    return %arg0, %c0_i32, %c0_i32_0 : i32, i32, i32
  }
}

</mosaic_0001>

<llo_original>
// kernel: tpu_custom_call.1
$region0: #{tpu_custom_call.1}
  #allocation0 [shape = 'u32[]', space=smem, size = 0x4, offset = 0x4, fixed_abs, tag = 'smem constant byte address 0x4 - core index']
  #allocation1 [shape = 'u32[72,128]{1,0:T(1,128)}', space=vmem, size = 0x9000, scoped, tag = 'internal scratch']
  %s0 = inlined_call_operand.hbm [shape: bf16[2,8,32], index: 0, kind: input, shape index: {}]
  %s1 = inlined_call_operand.hbm [shape: bf16[32,96], index: 1, kind: input, shape index: {}]
  %s2 = inlined_call_operand.vmem [shape: f32[1,96], index: 2, kind: input, shape index: {}]
  %s3 = inlined_call_operand.hbm [shape: bf16[32,32], index: 3, kind: input, shape index: {}]
  %s4 = inlined_call_operand.vmem [shape: f32[1,32], index: 4, kind: input, shape index: {}]
  %s5 = inlined_call_operand.vmem [shape: f32[1,8], index: 5, kind: input, shape index: {}]
  %s6 = inlined_call_operand.vmem [shape: f32[1,8], index: 6, kind: input, shape index: {}]
  %s7 = inlined_call_operand.hbm [shape: f32[2,8,32], index: 7, kind: output, shape index: {}]
  %s8 = sld [smem:[#allocation0]]
  $region73: #{tpu_custom_call.1} parent=0
    _
  %s10 = ssub.s32 1, %s8
  %s11 = scalar_select 0, %s10, %s8
  $region1: #{tpu_custom_call.1} parent=0
    #allocation2 [shape = 'u8[4096]{0}', space=vmem, size = 0x1000, scoped, tag = 'input window, operand 0']
    #allocation3 [shape = 's32[2]{0}', space=sflag, size = 0x8, scoped, tag = 'scoped memory for tpu_custom_call.1']
    #allocation4 [shape = 's32[2]{0}', space=sflag, size = 0x8, scoped, tag = 'scoped memory for tpu_custom_call.1']
    #allocation5 [shape = 'u8[8192]{0}', space=vmem, size = 0x2000, scoped, tag = 'input window, operand 1, single buffered']
    #allocation6 [shape = 's32[1]{0}', space=sflag, size = 0x4, scoped, tag = 'scoped memory for tpu_custom_call.1']
    #allocation7 [shape = 'u8[8192]{0}', space=vmem, size = 0x2000, scoped, tag = 'input window, operand 3, single buffered']
    #allocation8 [shape = 'u8[8192]{0}', space=vmem, size = 0x2000, scoped, tag = 'output window, operand 0']
    %12 = vsyncpa [#allocation3], 0
    %s13 = scalar_lea.sflag [#allocation3], 1
    %14 = vsyncpa %s13, 0
    %15 = vsyncpa [#allocation6], 0
    %16 = vsyncpa [#allocation4], 0
    %s17 = scalar_lea.sflag [#allocation4], 1
    %18 = vsyncpa %s17, 0
    loop: start=0, step=1, limit=4
    $region2: #{tpu_custom_call.1} parent=1 // loop_pre_header
      _
    $region3: #{tpu_custom_call.1} parent=1 // loop_header
      %s20 = sphi 0, %s24
      %p21 = scmp.ge.s32.totalorder %s20, 4
      %s30 = sphi 0, %s32
      %s33 = sphi 0, %s30
      %s34 = sphi 0, %s33
      %s50 = sphi 0, %s34
      %s54 = sphi 0, %s54
      %s56 = sphi 0, %s54
      %s57 = sphi 0, %s56
      %s71 = sphi 0, %s57
      %s75 = sphi 0, %s75
      %s77 = sphi 0, %s75
      %s78 = sphi 0, %s77
      %s92 = sphi 0, %s78
      %s96 = sphi 0, %s96
      %s98 = sphi 0, %s96
      %s99 = sphi 0, %s98
      %s113 = sphi 0, %s99
      %s117 = sphi 0, %s117
      %s119 = sphi 0, %s117
      %s120 = sphi 0, %s119
      %s134 = sphi 0, %s120
      %s138 = sphi 0, %s138
      %s140 = sphi 0, %s138
      %s141 = sphi 0, %s140
      %s155 = sphi 0, %s141
      %s159 = sphi 0, %s159
      %s161 = sphi 0, %s159
      %s162 = sphi 0, %s161
      %s176 = sphi 0, %s162
      %s182 = sphi 0, %s184
      %s185 = sphi 0, %s182
      %s186 = sphi 0, %s185
      %s202 = sphi 0, %s186
    $region4: #{tpu_custom_call.1} parent=1 // loop_header_branch
      %23 = sbr.rel (%p21) target = $region8
    $region5: #{tpu_custom_call.1} parent=1 // loop_body
      %s25 = ssub.s32 %s20, 1
      %s26 = ssub.s32 %s20, 2
      %s27 = sadd.s32 %s20, 1
      %s28 = ssub.s32 %s20, %s27
      %p29 = scmp.eq.s32.totalorder %s28, 0
      %s31 = sadd.s32 %s30, 1
      %s32 = scalar_select %p29, %s30, %s31
      %p35 = pneg %p29
      %p36 = scmp.eq.s32.totalorder %s20, 1
      %p37 = por %p35, %p36
      %p38 = scmp.ne.s32.totalorder %s30, %s33
      %p39 = scmp.eq.s32.totalorder %s20, 0
      %p40 = por %p38, %p39
      %p41 = scmp.ne.s32.totalorder %s30, %s33
      %p42 = scmp.eq.s32.totalorder %s25, 1
      %p43 = por %p41, %p42
      %p44 = scmp.ne.s32.totalorder %s33, %s34
      %p45 = scmp.eq.s32.totalorder %s25, 0
      %p46 = por %p44, %p45
      %p47 = scmp.ne.s32.totalorder %s33, %s34
      %p48 = scmp.eq.s32.totalorder %s26, 1
      %p49 = por %p47, %p48
      %p51 = scmp.ne.s32.totalorder %s34, %s50
      %p52 = scmp.eq.s32.totalorder %s26, 0
      %p53 = por %p51, %p52
      %s55 = sadd.s32 %s54, 1
      %p58 = scmp.eq.s32.totalorder %s20, 1
      %p59 = scmp.ne.s32.totalorder %s54, %s56
      %p60 = scmp.eq.s32.totalorder %s20, 0
      %p61 = por %p59, %p60
      %p62 = scmp.ne.s32.totalorder %s54, %s56
      %p63 = scmp.eq.s32.totalorder %s25, 1
      %p64 = por %p62, %p63
      %p65 = scmp.ne.s32.totalorder %s56, %s57
      %p66 = scmp.eq.s32.totalorder %s25, 0
      %p67 = por %p65, %p66
      %p68 = scmp.ne.s32.totalorder %s56, %s57
      %p69 = scmp.eq.s32.totalorder %s26, 1
      %p70 = por %p68, %p69
      %p72 = scmp.ne.s32.totalorder %s57, %s71
      %p73 = scmp.eq.s32.totalorder %s26, 0
      %p74 = por %p72, %p73
      %s76 = sadd.s32 %s75, 1
      %p79 = scmp.eq.s32.totalorder %s20, 1
      %p80 = scmp.ne.s32.totalorder %s75, %s77
      %p81 = scmp.eq.s32.totalorder %s20, 0
      %p82 = por %p80, %p81
      %p83 = scmp.ne.s32.totalorder %s75, %s77
      %p84 = scmp.eq.s32.totalorder %s25, 1
      %p85 = por %p83, %p84
      %p86 = scmp.ne.s32.totalorder %s77, %s78
      %p87 = scmp.eq.s32.totalorder %s25, 0
      %p88 = por %p86, %p87
      %p89 = scmp.ne.s32.totalorder %s77, %s78
      %p90 = scmp.eq.s32.totalorder %s26, 1
      %p91 = por %p89, %p90
      %p93 = scmp.ne.s32.totalorder %s78, %s92
      %p94 = scmp.eq.s32.totalorder %s26, 0
      %p95 = por %p93, %p94
      %s97 = sadd.s32 %s96, 1
      %p100 = scmp.eq.s32.totalorder %s20, 1
      %p101 = scmp.ne.s32.totalorder %s96, %s98
      %p102 = scmp.eq.s32.totalorder %s20, 0
      %p103 = por %p101, %p102
      %p104 = scmp.ne.s32.totalorder %s96, %s98
      %p105 = scmp.eq.s32.totalorder %s25, 1
      %p106 = por %p104, %p105
      %p107 = scmp.ne.s32.totalorder %s98, %s99
      %p108 = scmp.eq.s32.totalorder %s25, 0
      %p109 = por %p107, %p108
      %p110 = scmp.ne.s32.totalorder %s98, %s99
      %p111 = scmp.eq.s32.totalorder %s26, 1
      %p112 = por %p110, %p111
      %p114 = scmp.ne.s32.totalorder %s99, %s113
      %p115 = scmp.eq.s32.totalorder %s26, 0
      %p116 = por %p114, %p115
      %s118 = sadd.s32 %s117, 1
      %p121 = scmp.eq.s32.totalorder %s20, 1
      %p122 = scmp.ne.s32.totalorder %s117, %s119
      %p123 = scmp.eq.s32.totalorder %s20, 0
      %p124 = por %p122, %p123
      %p125 = scmp.ne.s32.totalorder %s117, %s119
      %p126 = scmp.eq.s32.totalorder %s25, 1
      %p127 = por %p125, %p126
      %p128 = scmp.ne.s32.totalorder %s119, %s120
      %p129 = scmp.eq.s32.totalorder %s25, 0
      %p130 = por %p128, %p129
      %p131 = scmp.ne.s32.totalorder %s119, %s120
      %p132 = scmp.eq.s32.totalorder %s26, 1
      %p133 = por %p131, %p132
      %p135 = scmp.ne.s32.totalorder %s120, %s134
      %p136 = scmp.eq.s32.totalorder %s26, 0
      %p137 = por %p135, %p136
      %s139 = sadd.s32 %s138, 1
      %p142 = scmp.eq.s32.totalorder %s20, 1
      %p143 = scmp.ne.s32.totalorder %s138, %s140
      %p144 = scmp.eq.s32.totalorder %s20, 0
      %p145 = por %p143, %p144
      %p146 = scmp.ne.s32.totalorder %s138, %s140
      %p147 = scmp.eq.s32.totalorder %s25, 1
      %p148 = por %p146, %p147
      %p149 = scmp.ne.s32.totalorder %s140, %s141
      %p150 = scmp.eq.s32.totalorder %s25, 0
      %p151 = por %p149, %p150
      %p152 = scmp.ne.s32.totalorder %s140, %s141
      %p153 = scmp.eq.s32.totalorder %s26, 1
      %p154 = por %p152, %p153
      %p156 = scmp.ne.s32.totalorder %s141, %s155
      %p157 = scmp.eq.s32.totalorder %s26, 0
      %p158 = por %p156, %p157
      %s160 = sadd.s32 %s159, 1
      %p163 = scmp.eq.s32.totalorder %s20, 1
      %p164 = scmp.ne.s32.totalorder %s159, %s161
      %p165 = scmp.eq.s32.totalorder %s20, 0
      %p166 = por %p164, %p165
      %p167 = scmp.ne.s32.totalorder %s159, %s161
      %p168 = scmp.eq.s32.totalorder %s25, 1
      %p169 = por %p167, %p168
      %p170 = scmp.ne.s32.totalorder %s161, %s162
      %p171 = scmp.eq.s32.totalorder %s25, 0
      %p172 = por %p170, %p171
      %p173 = scmp.ne.s32.totalorder %s161, %s162
      %p174 = scmp.eq.s32.totalorder %s26, 1
      %p175 = por %p173, %p174
      %p177 = scmp.ne.s32.totalorder %s162, %s176
      %p178 = scmp.eq.s32.totalorder %s26, 0
      %p179 = por %p177, %p178
      %s180 = ssub.s32 %s20, %s27
      %p181 = scmp.eq.s32.totalorder %s180, 0
      %s183 = sadd.s32 %s182, 1
      %s184 = scalar_select %p181, %s182, %s183
      %p187 = pneg %p181
      %p188 = scmp.eq.s32.totalorder %s20, 1
      %p189 = por %p187, %p188
      %p190 = scmp.ne.s32.totalorder %s182, %s185
      %p191 = scmp.eq.s32.totalorder %s20, 0
      %p192 = por %p190, %p191
      %p193 = scmp.ne.s32.totalorder %s182, %s185
      %p194 = scmp.eq.s32.totalorder %s25, 1
      %p195 = por %p193, %p194
      %p196 = scmp.ne.s32.totalorder %s185, %s186
      %p197 = scmp.eq.s32.totalorder %s25, 0
      %p198 = por %p196, %p197
      %p199 = scmp.ne.s32.totalorder %s185, %s186
      %p200 = scmp.eq.s32.totalorder %s26, 1
      %p201 = por %p199, %p200
      %p203 = scmp.ne.s32.totalorder %s186, %s202
      %p204 = scmp.eq.s32.totalorder %s26, 0
      %p205 = por %p203, %p204
      %p206 = scmp.le.s32.totalorder 1, %s20
      %p207 = scmp.lt.s32.totalorder %s20, 3
      %p208 = pnand %p206, %p207
      %p209 = pneg %p208
      // Predicated region
      $region9: #{tpu_custom_call.1} parent=5 // pred_check
        _
      $region10: #{tpu_custom_call.1} parent=5 // pred_check_branch
        %211 = sbr.rel (%p208) target = $region12
      $region11: #{tpu_custom_call.1} parent=5 // pred_region
        %s212 = ssub.s32 %s20, 1
        // Predicated region
        $region13: #{tpu_custom_call.1} parent=11 // pred_check
          %p213 = pneg %p67
        $region14: #{tpu_custom_call.1} parent=11 // pred_check_branch
          %215 = sbr.rel (%p213) target = $region16
        $region15: #{tpu_custom_call.1} parent=11 // pred_region
          %217 = vsyncadd [#allocation6], 0
          %s218 = sshll.u32 %s1, 4
          %s219 = int_to_ptr.hbm [resolvable:$true] %s218
          %s220 = sshll.u32 [#allocation5], 4
          %s221 = int_to_ptr.vmem [resolvable:$true] %s220
          %226 = dma.hbm_to_vmem [thread:$0]  %s219, 256, %s221, [#allocation6], 64, 64, 4
        $region16: #{tpu_custom_call.1} parent=11 // pred_fallthru
          _
        // Predicated region
        $region17: #{tpu_custom_call.1} parent=11 // pred_check
          %p227 = pneg %p88
        $region18: #{tpu_custom_call.1} parent=11 // pred_check_branch
          %229 = sbr.rel (%p227) target = $region20
        $region19: #{tpu_custom_call.1} parent=11 // pred_region
          _
        $region20: #{tpu_custom_call.1} parent=11 // pred_fallthru
          _
        // Predicated region
        $region21: #{tpu_custom_call.1} parent=11 // pred_check
          %p230 = pneg %p109
        $region22: #{tpu_custom_call.1} parent=11 // pred_check_branch
          %232 = sbr.rel (%p230) target = $region24
        $region23: #{tpu_custom_call.1} parent=11 // pred_region
          %234 = vsyncadd [#allocation6], 0
          %s235 = sshll.u32 %s3, 4
          %s236 = int_to_ptr.hbm [resolvable:$true] %s235
          %s237 = sshll.u32 [#allocation7], 4
          %s238 = int_to_ptr.vmem [resolvable:$true] %s237
          %243 = dma.hbm_to_vmem [thread:$0]  %s236, 256, %s238, [#allocation6], 64, 64, 4
        $region24: #{tpu_custom_call.1} parent=11 // pred_fallthru
          _
        // Predicated region
        $region25: #{tpu_custom_call.1} parent=11 // pred_check
          %p244 = pneg %p130
        $region26: #{tpu_custom_call.1} parent=11 // pred_check_branch
          %246 = sbr.rel (%p244) target = $region28
        $region27: #{tpu_custom_call.1} parent=11 // pred_region
          _
        $region28: #{tpu_custom_call.1} parent=11 // pred_fallthru
          _
        // Predicated region
        $region29: #{tpu_custom_call.1} parent=11 // pred_check
          %p247 = pneg %p151
        $region30: #{tpu_custom_call.1} parent=11 // pred_check_branch
          %249 = sbr.rel (%p247) target = $region32
        $region31: #{tpu_custom_call.1} parent=11 // pred_region
          _
        $region32: #{tpu_custom_call.1} parent=11 // pred_fallthru
          _
        // Predicated region
        $region33: #{tpu_custom_call.1} parent=11 // pred_check
          %p250 = pneg %p172
        $region34: #{tpu_custom_call.1} parent=11 // pred_check_branch
          %252 = sbr.rel (%p250) target = $region36
        $region35: #{tpu_custom_call.1} parent=11 // pred_region
          _
        $region36: #{tpu_custom_call.1} parent=11 // pred_fallthru
          _
      $region12: #{tpu_custom_call.1} parent=5 // pred_fallthru
        _
      %p253 = scmp.lt.s32.totalorder %s20, 2
      // Predicated region
      $region37: #{tpu_custom_call.1} parent=5 // pred_check
        %p254 = pneg %p253
      $region38: #{tpu_custom_call.1} parent=5 // pred_check_branch
        %256 = sbr.rel (%p254) target = $region40
      $region39: #{tpu_custom_call.1} parent=5 // pred_region
        // Predicated region
        $region41: #{tpu_custom_call.1} parent=39 // pred_check
          %p257 = pneg %p40
        $region42: #{tpu_custom_call.1} parent=39 // pred_check_branch
          %259 = sbr.rel (%p257) target = $region44
        $region43: #{tpu_custom_call.1} parent=39 // pred_region
          %s260 = sand.u32 %s30, 1
          %s261 = scalar_lea.sflag [#allocation3], %s260
          %s262 = sand.u32 %s30, 1
          %s263 = smul.addr %s262, 4
          %s264 = scalar_lea.vmem [#allocation2], %s263
          %266 = vsyncadd %s261, 0
          %s267 = smul.addr %s20, 4
          %s268 = scalar_lea.hbm %s0, %s267
          %s270 = sshll.u32 %s268, 4
          %s271 = int_to_ptr.hbm [resolvable:$true] %s270
          %s272 = sshll.u32 %s264, 4
          %s273 = int_to_ptr.vmem [resolvable:$true] %s272
          %275 = dma.hbm_to_vmem [thread:$0]  %s271, 64, %s273, %s261
        $region44: #{tpu_custom_call.1} parent=39 // pred_fallthru
          _
      $region40: #{tpu_custom_call.1} parent=5 // pred_fallthru
        _
      %p276 = scmp.le.s32.totalorder 1, %s20
      %p277 = scmp.lt.s32.totalorder %s20, 3
      %p278 = pnand %p276, %p277
      %p279 = pneg %p278
      // Predicated region
      $region45: #{tpu_custom_call.1} parent=5 // pred_check
        _
      $region46: #{tpu_custom_call.1} parent=5 // pred_check_branch
        %281 = sbr.rel (%p278) target = $region48
      $region47: #{tpu_custom_call.1} parent=5 // pred_region
        %s282 = ssub.s32 %s20, 1
        %s283 = sand.u32 %s33, 1
        %s284 = scalar_lea.sflag [#allocation3], %s283
        %s285 = sand.u32 %s33, 1
        %s286 = smul.addr %s285, 4
        %s287 = scalar_lea.vmem [#allocation2], %s286
        // Predicated region
        $region49: #{tpu_custom_call.1} parent=47 // pred_check
          %p288 = pneg %p46
        $region50: #{tpu_custom_call.1} parent=47 // pred_check_branch
          %290 = sbr.rel (%p288) target = $region52
        $region51: #{tpu_custom_call.1} parent=47 // pred_region
          %292 = dma.done %s284, 64
        $region52: #{tpu_custom_call.1} parent=47 // pred_fallthru
          _
        // Predicated region
        $region53: #{tpu_custom_call.1} parent=47 // pred_check
          %p293 = pneg %p67
        $region54: #{tpu_custom_call.1} parent=47 // pred_check_branch
          %295 = sbr.rel (%p293) target = $region56
        $region55: #{tpu_custom_call.1} parent=47 // pred_region
          %297 = dma.done [#allocation6], 256
        $region56: #{tpu_custom_call.1} parent=47 // pred_fallthru
          _
        // Predicated region
        $region57: #{tpu_custom_call.1} parent=47 // pred_check
          %p298 = pneg %p109
        $region58: #{tpu_custom_call.1} parent=47 // pred_check_branch
          %300 = sbr.rel (%p298) target = $region60
        $region59: #{tpu_custom_call.1} parent=47 // pred_region
          %302 = dma.done [#allocation6], 256
        $region60: #{tpu_custom_call.1} parent=47 // pred_fallthru
          _
        %s303 = sand.u32 %s33, 1
        %s304 = scalar_lea.sflag [#allocation3], %s303
        %s305 = sand.u32 %s33, 1
        %s306 = smul.addr %s305, 4
        %s307 = scalar_lea.vmem [#allocation2], %s306
        %p308 = pneg %p46
        %p309 = pneg %p43
        %p310 = pneg %p67
        %p311 = pneg %p64
        %p312 = pneg %p88
        %p313 = pneg %p85
        %p314 = pneg %p109
        %p315 = pneg %p106
        %p316 = pneg %p130
        %p317 = pneg %p127
        %p318 = pneg %p151
        %p319 = pneg %p148
        %p320 = pneg %p172
        %p321 = pneg %p169
        %p322 = pneg %p198
        %p323 = pneg %p195
        %s324 = sand.u32 %s185, 1
        %s325 = scalar_lea.sflag [#allocation4], %s324
        %s326 = sand.u32 %s185, 1
        %s327 = smul.addr %s326, 8
        %s328 = scalar_lea.vmem [#allocation8], %s327
        %v330 = vld [vmem:[%s287] sm:$0xf]
        %v331 = vld [vmem:[#allocation5] sm:$0xf]
        %v332 = vld [vmem:[#allocation5 + $0x4] sm:$0xf]
        %v333 = vld [vmem:[#allocation5 + $0x8] sm:$0xf]
        %v334 = vld [vmem:[#allocation5 + $0xc] sm:$0xf]
        %v335 = vld [vmem:[%s2] sm:$0x1]
        %v337 = vperm.slane %v335, 0
        %v343 = vunpack.c.l.b16 %v331
        %v344 = vunpack.c.l.b16 %v332
        %v345 = vunpack.c.l.b16 %v333
        %v346 = vunpack.c.l.b16 %v334
        %v347 = vpack.c.b16 %v344, %v343
        %v348 = vpack.c.b16 %v346, %v345
        %vm351 = vcmask 261120
        %v353 = vsel %vm351, %v330, 0
        %355 = vmatpush.bf16.msra.mxu0 0
        %356 = vmatpush.bf16.msra.mxu0 0
        %357 = vmatpush.bf16.msra.mxu0 0
        %358 = vmatpush.bf16.msra.mxu0 0
        %359 = vmatpush.bf16.msra.mxu0 0
        %360 = vmatpush.bf16.msra.mxu0 0
        %361 = vmatpush.bf16.msra.mxu0 %v348
        %362 = vmatpush.bf16.msra.mxu0 %v347
        %363 = vmatmul.bf16.gmra.mxu0 %v353
        %v364 = vpop.f32.mrf.mxu0
        %v365 = vadd.f32 %v337, %v364
        %v366 = vpop.f32.mrf.mxu0
        %367 = vdwg.mxu0
        %369 = vrot.lane.b32.xlu0 %v365, 120
        %v370 = vpop.permute.xlu0 %369
        %372 = vrot.lane.b32.xlu0 %v365, 112
        %v373 = vpop.permute.xlu0 %372
        %375 = vrot.lane.b32.xlu0 %v365, 104
        %v376 = vpop.permute.xlu0 %375
        %v378 = vld [vmem:[%s5] sm:$0x1]
        %v379 = vmul.f32 %v365, %v365
        %v380 = vmul.f32 %v370, %v370
        %v381 = vmul.f32 %v373, %v373
        %v382 = vmul.f32 %v376, %v376
        %vm383 = vcmask 64512
        %v384 = vsel %vm383, %v379, 0.0
        %385 = vadd.xlane.f32.xlu0 %v384
        %v386 = vpop.xlane.xlu0 %385
        %v387 = vsel %vm383, %v380, 0.0
        %388 = vadd.xlane.f32.xlu0 %v387
        %v389 = vpop.xlane.xlu0 %388
        %v390 = vsel %vm383, %v381, 0.0
        %391 = vadd.xlane.f32.xlu0 %v390
        %v392 = vpop.xlane.xlu0 %391
        %v393 = vsel %vm383, %v382, 0.0
        %394 = vadd.xlane.f32.xlu0 %v393
        %v395 = vpop.xlane.xlu0 %394
        %v396 = vrcp.pop 8.0
        %v397 = vmul.f32 8.0, %v396
        %v398 = vsub.f32 1.0, %v397
        %v399 = vmul.f32 %v396, %v398
        %v400 = vadd.f32 %v396, %v399
        %vm401 = vweird.f32 %v396
        %v402 = vsel %vm401, %v396, %v400
        %v403 = vmul.f32 %v386, %v402
        %v404 = vmul.f32 %v389, %v402
        %v405 = vmul.f32 %v392, %v402
        %v406 = vmul.f32 %v395, %v402
        %v407 = vadd.f32 %v403, 1.1920929e-07
        %v408 = vadd.f32 %v404, 1.1920929e-07
        %v409 = vadd.f32 %v405, 1.1920929e-07
        %v410 = vadd.f32 %v406, 1.1920929e-07
        %v411 = vrsqrt.pop %v407
        %v412 = vmul.f32 %v411, %v407
        %v413 = vmul.f32 %v412, %v411
        %v414 = vmul.f32 0.5, %v413
        %v415 = vsub.f32 1.5, %v414
        %v416 = vmul.f32 %v411, %v415
        %vm417 = vweird.f32 %v407
        %vm418 = vweird.f32 %v411
        %vm419 = vmor %vm417, %vm418
        %v420 = vsel %vm419, %v411, %v416
        %v421 = vrsqrt.pop %v408
        %v422 = vmul.f32 %v421, %v408
        %v423 = vmul.f32 %v422, %v421
        %v424 = vmul.f32 0.5, %v423
        %v425 = vsub.f32 1.5, %v424
        %v426 = vmul.f32 %v421, %v425
        %vm427 = vweird.f32 %v408
        %vm428 = vweird.f32 %v421
        %vm429 = vmor %vm427, %vm428
        %v430 = vsel %vm429, %v421, %v426
        %v431 = vrsqrt.pop %v409
        %v432 = vmul.f32 %v431, %v409
        %v433 = vmul.f32 %v432, %v431
        %v434 = vmul.f32 0.5, %v433
        %v435 = vsub.f32 1.5, %v434
        %v436 = vmul.f32 %v431, %v435
        %vm437 = vweird.f32 %v409
        %vm438 = vweird.f32 %v431
        %vm439 = vmor %vm437, %vm438
        %v440 = vsel %vm439, %v431, %v436
        %v441 = vrsqrt.pop %v410
        %v442 = vmul.f32 %v441, %v410
        %v443 = vmul.f32 %v442, %v441
        %v444 = vmul.f32 0.5, %v443
        %v445 = vsub.f32 1.5, %v444
        %v446 = vmul.f32 %v441, %v445
        %vm447 = vweird.f32 %v410
        %vm448 = vweird.f32 %v441
        %vm449 = vmor %vm447, %vm448
        %v450 = vsel %vm449, %v441, %v446
        %v451 = vmul.f32 %v365, %v420
        %v452 = vmul.f32 %v370, %v430
        %v453 = vmul.f32 %v373, %v440
        %v454 = vmul.f32 %v376, %v450
        %v456 = vperm.slane %v378, 0
        %v458 = vmul.f32 %v451, %v456
        %v459 = vmul.f32 %v452, %v456
        %v460 = vmul.f32 %v453, %v456
        %v461 = vmul.f32 %v454, %v456
        %v462 = vld [vmem:[%s6] sm:$0x1]
        %467 = vrot.lane.b32.xlu0 %v379, 96
        %v468 = vpop.permute.xlu0 %467
        %469 = vrot.lane.b32.xlu0 %v380, 96
        %v470 = vpop.permute.xlu0 %469
        %471 = vrot.lane.b32.xlu0 %v381, 96
        %v472 = vpop.permute.xlu0 %471
        %473 = vrot.lane.b32.xlu0 %v382, 96
        %v474 = vpop.permute.xlu0 %473
        %v479 = vsel %vm383, %v468, 0.0
        %480 = vadd.xlane.f32.xlu0 %v479
        %v481 = vpop.xlane.xlu0 %480
        %v482 = vsel %vm383, %v470, 0.0
        %483 = vadd.xlane.f32.xlu0 %v482
        %v484 = vpop.xlane.xlu0 %483
        %v485 = vsel %vm383, %v472, 0.0
        %486 = vadd.xlane.f32.xlu0 %v485
        %v487 = vpop.xlane.xlu0 %486
        %v488 = vsel %vm383, %v474, 0.0
        %489 = vadd.xlane.f32.xlu0 %v488
        %v490 = vpop.xlane.xlu0 %489
        %v491 = vmul.f32 %v481, %v402
        %v492 = vmul.f32 %v484, %v402
        %v493 = vmul.f32 %v487, %v402
        %v494 = vmul.f32 %v490, %v402
        %v495 = vadd.f32 %v491, 1.1920929e-07
        %v496 = vadd.f32 %v492, 1.1920929e-07
        %v497 = vadd.f32 %v493, 1.1920929e-07
        %v498 = vadd.f32 %v494, 1.1920929e-07
        %v499 = vrsqrt.pop %v495
        %v500 = vmul.f32 %v499, %v495
        %v501 = vmul.f32 %v500, %v499
        %v502 = vmul.f32 0.5, %v501
        %v503 = vsub.f32 1.5, %v502
        %v504 = vmul.f32 %v499, %v503
        %vm505 = vweird.f32 %v495
        %vm506 = vweird.f32 %v499
        %vm507 = vmor %vm505, %vm506
        %v508 = vsel %vm507, %v499, %v504
        %v509 = vrsqrt.pop %v496
        %v510 = vmul.f32 %v509, %v496
        %v511 = vmul.f32 %v510, %v509
        %v512 = vmul.f32 0.5, %v511
        %v513 = vsub.f32 1.5, %v512
        %v514 = vmul.f32 %v509, %v513
        %vm515 = vweird.f32 %v496
        %vm516 = vweird.f32 %v509
        %vm517 = vmor %vm515, %vm516
        %v518 = vsel %vm517, %v509, %v514
        %v519 = vrsqrt.pop %v497
        %v520 = vmul.f32 %v519, %v497
        %v521 = vmul.f32 %v520, %v519
        %v522 = vmul.f32 0.5, %v521
        %v523 = vsub.f32 1.5, %v522
        %v524 = vmul.f32 %v519, %v523
        %vm525 = vweird.f32 %v497
        %vm526 = vweird.f32 %v519
        %vm527 = vmor %vm525, %vm526
        %v528 = vsel %vm527, %v519, %v524
        %v529 = vrsqrt.pop %v498
        %v530 = vmul.f32 %v529, %v498
        %v531 = vmul.f32 %v530, %v529
        %v532 = vmul.f32 0.5, %v531
        %v533 = vsub.f32 1.5, %v532
        %v534 = vmul.f32 %v529, %v533
        %vm535 = vweird.f32 %v498
        %vm536 = vweird.f32 %v529
        %vm537 = vmor %vm535, %vm536
        %v538 = vsel %vm537, %v529, %v534
        %v539 = vmul.f32 %v365, %v508
        %v540 = vmul.f32 %v370, %v518
        %v541 = vmul.f32 %v373, %v528
        %v542 = vmul.f32 %v376, %v538
        %v544 = vperm.slane %v462, 0
        %545 = vrot.lane.b32.xlu0 %v544, 32
        %v546 = vpop.permute.xlu0 %545
        %v548 = vmul.f32 %v539, %v546
        %v549 = vmul.f32 %v540, %v546
        %v550 = vmul.f32 %v541, %v546
        %v551 = vmul.f32 %v542, %v546
        %v552 = vpack.c.bf16 %v458, %v458
        %v553 = vpack.c.bf16 %v459, %v459
        %v554 = vpack.c.bf16 %v460, %v460
        %v555 = vpack.c.bf16 %v461, %v461
        %v556 = vpack.c.bf16 %v548, %v548
        %v557 = vpack.c.bf16 %v549, %v549
        %v558 = vpack.c.bf16 %v550, %v550
        %v559 = vpack.c.bf16 %v551, %v551
        %v561 = vunpack.c.l.b16 %v556
        %v562 = vpack.c.b16 %v561, %v561
        %563 = vrot.lane.b32.xlu0 %v562, 96
        %v564 = vpop.permute.xlu0 %563
        %v566 = vsel %vm383, %v552, 0
        %v569 = vsel %vm383, %v564, 0
        %571 = vmatpush.bf16.xpose.msra.mxu0 0
        %572 = vmatpush.bf16.xpose.msra.mxu0 0
        %573 = vmatpush.bf16.xpose.msra.mxu0 0
        %574 = vmatpush.bf16.xpose.msra.mxu0 0
        %575 = vmatpush.bf16.xpose.msra.mxu0 0
        %576 = vmatpush.bf16.xpose.msra.mxu0 0
        %577 = vmatpush.bf16.xpose.msra.mxu0 0
        %578 = vmatpush.bf16.xpose.msra.mxu0 %v569
        %579 = vmatmul.bf16.gmra.mxu0 %v566
        %v580 = vpop.f32.mrf.mxu0
        %v581 = vadd.f32 0.0, %v580
        %v582 = vpop.f32.mrf.mxu0
        %583 = vdwg.mxu0
        %v585 = vunpack.c.l.b16 %v557
        %v586 = vpack.c.b16 %v585, %v585
        %587 = vrot.lane.b32.xlu0 %v586, 96
        %v588 = vpop.permute.xlu0 %587
        %v590 = vsel %vm383, %v553, 0
        %v593 = vsel %vm383, %v588, 0
        %595 = vmatpush.bf16.xpose.msra.mxu0 0
        %596 = vmatpush.bf16.xpose.msra.mxu0 0
        %597 = vmatpush.bf16.xpose.msra.mxu0 0
        %598 = vmatpush.bf16.xpose.msra.mxu0 0
        %599 = vmatpush.bf16.xpose.msra.mxu0 0
        %600 = vmatpush.bf16.xpose.msra.mxu0 0
        %601 = vmatpush.bf16.xpose.msra.mxu0 0
        %602 = vmatpush.bf16.xpose.msra.mxu0 %v593
        %603 = vmatmul.bf16.gmra.mxu0 %v590
        %v604 = vpop.f32.mrf.mxu0
        %v605 = vadd.f32 0.0, %v604
        %v606 = vpop.f32.mrf.mxu0
        %607 = vdwg.mxu0
        %v609 = vunpack.c.l.b16 %v558
        %v610 = vpack.c.b16 %v609, %v609
        %611 = vrot.lane.b32.xlu0 %v610, 96
        %v612 = vpop.permute.xlu0 %611
        %v614 = vsel %vm383, %v554, 0
        %v617 = vsel %vm383, %v612, 0
        %619 = vmatpush.bf16.xpose.msra.mxu0 0
        %620 = vmatpush.bf16.xpose.msra.mxu0 0
        %621 = vmatpush.bf16.xpose.msra.mxu0 0
        %622 = vmatpush.bf16.xpose.msra.mxu0 0
        %623 = vmatpush.bf16.xpose.msra.mxu0 0
        %624 = vmatpush.bf16.xpose.msra.mxu0 0
        %625 = vmatpush.bf16.xpose.msra.mxu0 0
        %626 = vmatpush.bf16.xpose.msra.mxu0 %v617
        %627 = vmatmul.bf16.gmra.mxu0 %v614
        %v628 = vpop.f32.mrf.mxu0
        %v629 = vadd.f32 0.0, %v628
        %v630 = vpop.f32.mrf.mxu0
        %631 = vdwg.mxu0
        %v633 = vunpack.c.l.b16 %v559
        %v634 = vpack.c.b16 %v633, %v633
        %635 = vrot.lane.b32.xlu0 %v634, 96
        %v636 = vpop.permute.xlu0 %635
        %v638 = vsel %vm383, %v555, 0
        %v641 = vsel %vm383, %v636, 0
        %643 = vmatpush.bf16.xpose.msra.mxu0 0
        %644 = vmatpush.bf16.xpose.msra.mxu0 0
        %645 = vmatpush.bf16.xpose.msra.mxu0 0
        %646 = vmatpush.bf16.xpose.msra.mxu0 0
        %647 = vmatpush.bf16.xpose.msra.mxu0 0
        %648 = vmatpush.bf16.xpose.msra.mxu0 0
        %649 = vmatpush.bf16.xpose.msra.mxu0 0
        %650 = vmatpush.bf16.xpose.msra.mxu0 %v641
        %651 = vmatmul.bf16.gmra.mxu0 %v638
        %v652 = vpop.f32.mrf.mxu0
        %v653 = vadd.f32 0.0, %v652
        %v654 = vpop.f32.mrf.mxu0
        %655 = vdwg.mxu0
        %v656 = vmul.f32 %v581, 0.35355338
        %v657 = vmul.f32 %v605, 0.35355338
        %v658 = vmul.f32 %v629, 0.35355338
        %v659 = vmul.f32 %v653, 0.35355338
        %v660 = vsel %vm383, %v656, -inf
        %661 = vmax.xlane.f32.xlu0 %v660
        %v662 = vpop.xlane.xlu0 %661
        %v663 = vsel %vm383, %v657, -inf
        %664 = vmax.xlane.f32.xlu0 %v663
        %v665 = vpop.xlane.xlu0 %664
        %v666 = vsel %vm383, %v658, -inf
        %667 = vmax.xlane.f32.xlu0 %v666
        %v668 = vpop.xlane.xlu0 %667
        %v669 = vsel %vm383, %v659, -inf
        %670 = vmax.xlane.f32.xlu0 %v669
        %v671 = vpop.xlane.xlu0 %670
        %v672 = vsub.f32 %v656, %v662
        %v673 = vsub.f32 %v657, %v665
        %v674 = vsub.f32 %v658, %v668
        %v675 = vsub.f32 %v659, %v671
        %v676 = vmul.f32 %v672, 1.442695
        %v677 = vpow.pop %v676
        %v678 = vmul.f32 %v673, 1.442695
        %v679 = vpow.pop %v678
        %v680 = vmul.f32 %v674, 1.442695
        %v681 = vpow.pop %v680
        %v682 = vmul.f32 %v675, 1.442695
        %v683 = vpow.pop %v682
        %v684 = vsel %vm383, %v677, 0.0
        %685 = vadd.xlane.f32.xlu0 %v684
        %v686 = vpop.xlane.xlu0 %685
        %v687 = vsel %vm383, %v679, 0.0
        %688 = vadd.xlane.f32.xlu0 %v687
        %v689 = vpop.xlane.xlu0 %688
        %v690 = vsel %vm383, %v681, 0.0
        %691 = vadd.xlane.f32.xlu0 %v690
        %v692 = vpop.xlane.xlu0 %691
        %v693 = vsel %vm383, %v683, 0.0
        %694 = vadd.xlane.f32.xlu0 %v693
        %v695 = vpop.xlane.xlu0 %694
        %v696 = vrcp.pop %v686
        %v697 = vrcp.pop %v689
        %v698 = vrcp.pop %v692
        %v699 = vrcp.pop %v695
        %v700 = vmul.f32 %v677, %v696
        %v701 = vmul.f32 %v679, %v697
        %v702 = vmul.f32 %v681, %v698
        %v703 = vmul.f32 %v683, %v699
        %v704 = vpack.c.bf16 %v700, %v700
        %v705 = vpack.c.bf16 %v701, %v701
        %v706 = vpack.c.bf16 %v702, %v702
        %v707 = vpack.c.bf16 %v703, %v703
        %v708 = vpack.c.bf16 %v365, %v365
        %v709 = vpack.c.bf16 %v370, %v370
        %v710 = vpack.c.bf16 %v373, %v373
        %v711 = vpack.c.bf16 %v376, %v376
        %v713 = vunpack.c.l.b16 %v708
        %v714 = vpack.c.b16 %v713, %v713
        %715 = vrot.lane.b32.xlu0 %v714, 64
        %v716 = vpop.permute.xlu0 %715
        %v718 = vsel %vm383, %v704, 0
        %vm720 = vcmask 1043456
        %v722 = vsel %vm720, %v716, 0
        %724 = vmatpush.bf16.msra.mxu0 0
        %725 = vmatpush.bf16.msra.mxu0 0
        %726 = vmatpush.bf16.msra.mxu0 0
        %727 = vmatpush.bf16.msra.mxu0 0
        %728 = vmatpush.bf16.msra.mxu0 0
        %729 = vmatpush.bf16.msra.mxu0 0
        %730 = vmatpush.bf16.msra.mxu0 0
        %731 = vmatpush.bf16.msra.mxu0 %v722
        %732 = vmatmul.bf16.gmra.mxu0 %v718
        %v733 = vpop.f32.mrf.mxu0
        %v734 = vadd.f32 0.0, %v733
        %v735 = vpop.f32.mrf.mxu0
        %736 = vdwg.mxu0
        %v738 = vunpack.c.l.b16 %v709
        %v739 = vpack.c.b16 %v738, %v738
        %740 = vrot.lane.b32.xlu0 %v739, 64
        %v741 = vpop.permute.xlu0 %740
        %v743 = vsel %vm383, %v705, 0
        %v746 = vsel %vm720, %v741, 0
        %748 = vmatpush.bf16.msra.mxu0 0
        %749 = vmatpush.bf16.msra.mxu0 0
        %750 = vmatpush.bf16.msra.mxu0 0
        %751 = vmatpush.bf16.msra.mxu0 0
        %752 = vmatpush.bf16.msra.mxu0 0
        %753 = vmatpush.bf16.msra.mxu0 0
        %754 = vmatpush.bf16.msra.mxu0 0
        %755 = vmatpush.bf16.msra.mxu0 %v746
        %756 = vmatmul.bf16.gmra.mxu0 %v743
        %v757 = vpop.f32.mrf.mxu0
        %v758 = vadd.f32 0.0, %v757
        %v759 = vpop.f32.mrf.mxu0
        %760 = vdwg.mxu0
        %v762 = vunpack.c.l.b16 %v710
        %v763 = vpack.c.b16 %v762, %v762
        %764 = vrot.lane.b32.xlu0 %v763, 64
        %v765 = vpop.permute.xlu0 %764
        %v767 = vsel %vm383, %v706, 0
        %v770 = vsel %vm720, %v765, 0
        %772 = vmatpush.bf16.msra.mxu0 0
        %773 = vmatpush.bf16.msra.mxu0 0
        %774 = vmatpush.bf16.msra.mxu0 0
        %775 = vmatpush.bf16.msra.mxu0 0
        %776 = vmatpush.bf16.msra.mxu0 0
        %777 = vmatpush.bf16.msra.mxu0 0
        %778 = vmatpush.bf16.msra.mxu0 0
        %779 = vmatpush.bf16.msra.mxu0 %v770
        %780 = vmatmul.bf16.gmra.mxu0 %v767
        %v781 = vpop.f32.mrf.mxu0
        %v782 = vadd.f32 0.0, %v781
        %v783 = vpop.f32.mrf.mxu0
        %784 = vdwg.mxu0
        %v786 = vunpack.c.l.b16 %v711
        %v787 = vpack.c.b16 %v786, %v786
        %788 = vrot.lane.b32.xlu0 %v787, 64
        %v789 = vpop.permute.xlu0 %788
        %v791 = vsel %vm383, %v707, 0
        %v794 = vsel %vm720, %v789, 0
        %796 = vmatpush.bf16.msra.mxu0 0
        %797 = vmatpush.bf16.msra.mxu0 0
        %798 = vmatpush.bf16.msra.mxu0 0
        %799 = vmatpush.bf16.msra.mxu0 0
        %800 = vmatpush.bf16.msra.mxu0 0
        %801 = vmatpush.bf16.msra.mxu0 0
        %802 = vmatpush.bf16.msra.mxu0 0
        %803 = vmatpush.bf16.msra.mxu0 %v794
        %804 = vmatmul.bf16.gmra.mxu0 %v791
        %v805 = vpop.f32.mrf.mxu0
        %v806 = vadd.f32 0.0, %v805
        %v807 = vpop.f32.mrf.mxu0
        %808 = vdwg.mxu0
        %810 = vrot.lane.b32.xlu0 %v758, 8
        %v811 = vpop.permute.xlu0 %810
        %814 = vrot.lane.b32.xlu0 %v782, 16
        %v815 = vpop.permute.xlu0 %814
        %818 = vrot.lane.b32.xlu0 %v806, 24
        %v819 = vpop.permute.xlu0 %818
        %v821 = vsel %vm383, %v734, %v811
        %vm822 = vcmask 130048
        %v823 = vsel %vm822, %v821, %v815
        %vm824 = vcmask 195584
        %v825 = vsel %vm824, %v823, %v819
        %v826 = vpack.c.bf16 %v825, %v825
        %v827 = vld [vmem:[#allocation7] sm:$0xf]
        %v828 = vld [vmem:[#allocation7 + $0x4] sm:$0xf]
        %v829 = vld [vmem:[#allocation7 + $0x8] sm:$0xf]
        %v830 = vld [vmem:[#allocation7 + $0xc] sm:$0xf]
        %v831 = vld [vmem:[%s4] sm:$0x1]
        %v833 = vperm.slane %v831, 0
        %v839 = vunpack.c.l.b16 %v827
        %v840 = vunpack.c.l.b16 %v828
        %v841 = vunpack.c.l.b16 %v829
        %v842 = vunpack.c.l.b16 %v830
        %v843 = vpack.c.b16 %v840, %v839
        %v844 = vpack.c.b16 %v842, %v841
        %v848 = vsel %vm351, %v826, 0
        %850 = vmatpush.bf16.msra.mxu0 0
        %851 = vmatpush.bf16.msra.mxu0 0
        %852 = vmatpush.bf16.msra.mxu0 0
        %853 = vmatpush.bf16.msra.mxu0 0
        %854 = vmatpush.bf16.msra.mxu0 0
        %855 = vmatpush.bf16.msra.mxu0 0
        %856 = vmatpush.bf16.msra.mxu0 %v844
        %857 = vmatpush.bf16.msra.mxu0 %v843
        %858 = vmatmul.bf16.gmra.mxu0 %v848
        %v859 = vpop.f32.mrf.mxu0
        %v860 = vadd.f32 %v833, %v859
        %v861 = vpop.f32.mrf.mxu0
        %862 = vdwg.mxu0
        %863 = vst.msk [vmem:[%s328] sm:$0xff] %vm351, %v860
        %s864 = sand.u32 %s185, 1
        %s865 = scalar_lea.sflag [#allocation4], %s864
        %s866 = sand.u32 %s185, 1
        %s867 = smul.addr %s866, 8
        %s868 = scalar_lea.vmem [#allocation8], %s867
        // Predicated region
        $region61: #{tpu_custom_call.1} parent=47 // pred_check
          %p869 = pneg %p195
        $region62: #{tpu_custom_call.1} parent=47 // pred_check_branch
          %871 = sbr.rel (%p869) target = $region64
        $region63: #{tpu_custom_call.1} parent=47 // pred_region
          %873 = vsyncadd %s865, 0
          %s874 = smul.addr %s25, 8
          %s875 = scalar_lea.hbm %s7, %s874
          %s877 = sshll.u32 %s868, 4
          %s878 = int_to_ptr.vmem [resolvable:$true] %s877
          %s879 = sshll.u32 %s875, 4
          %s880 = int_to_ptr.hbm [resolvable:$true] %s879
          %882 = dma.vmem_to_hbm [thread:$0]  %s878, 128, %s880, %s865
        $region64: #{tpu_custom_call.1} parent=47 // pred_fallthru
          _
      $region48: #{tpu_custom_call.1} parent=5 // pred_fallthru
        _
      %p883 = scmp.le.s32.totalorder 2, %s20
      // Predicated region
      $region65: #{tpu_custom_call.1} parent=5 // pred_check
        %p884 = pneg %p883
      $region66: #{tpu_custom_call.1} parent=5 // pred_check_branch
        %886 = sbr.rel (%p884) target = $region68
      $region67: #{tpu_custom_call.1} parent=5 // pred_region
        %s887 = ssub.s32 %s20, 2
        // Predicated region
        $region69: #{tpu_custom_call.1} parent=67 // pred_check
          %p888 = pneg %p201
        $region70: #{tpu_custom_call.1} parent=67 // pred_check_branch
          %890 = sbr.rel (%p888) target = $region72
        $region71: #{tpu_custom_call.1} parent=67 // pred_region
          %s891 = sand.u32 %s186, 1
          %s892 = scalar_lea.sflag [#allocation4], %s891
          %s893 = sand.u32 %s186, 1
          %s894 = smul.addr %s893, 8
          %s895 = scalar_lea.vmem [#allocation8], %s894
          %897 = dma.done %s892, 128
        $region72: #{tpu_custom_call.1} parent=67 // pred_fallthru
          _
      $region68: #{tpu_custom_call.1} parent=5 // pred_fallthru
        _
    $region6: #{tpu_custom_call.1} parent=1 // loop_footer
      %s24 = sadd.s32 1, %s20
    $region7: #{tpu_custom_call.1} parent=1 // loop_footer_branch
      %19 = sbr.rel target = $region3
    $region8: #{tpu_custom_call.1} parent=1 // loop_exit
      _
    %898 = vsyncpa [#allocation3], 1
    %s899 = scalar_lea.sflag [#allocation3], 1
    %900 = vsyncpa %s899, 1
    %901 = vsyncpa [#allocation6], 1
    %902 = vsyncpa [#allocation4], 1
    %s903 = scalar_lea.sflag [#allocation4], 1
    %904 = vsyncpa %s903, 1

</llo_original>
